<compile_context>
chip_gen: v5e
topology: v5e:2x2
jax: 0.10.0
libtpu: 0.0.40
codegen_flags: <defaults>
</compile_context>

<pallas_src>
import functools

import jax
import jax.numpy as jnp
from jax.experimental import pallas as pl
from jax.experimental.pallas import tpu as pltpu

HIDDEN = 128
OUT = 2
OUT_PAD = 128   # lane-dense padded output width


def _round_up(x, m):
    return ((x + m - 1) // m) * m


def _mlp_kernel(x_ref, w1_ref, b1_ref, w2_ref, b2_ref, w3_ref, b3_ref,
                w4_ref, b4_ref, o_ref):
    # One batch tile per grid step; all 4 matmuls + activations fused in VMEM.
    # Matmul operands are bf16, accumulation + elementwise math in f32.
    x = x_ref[...]

    h = jnp.dot(x, w1_ref[...], preferred_element_type=jnp.float32) + b1_ref[...]
    h = jnp.maximum(h, 0.0)                                   # ReLU

    h = jnp.dot(h.astype(w2_ref.dtype), w2_ref[...],
                preferred_element_type=jnp.float32) + b2_ref[...]
    h = jnp.maximum(h, 0.0)                                   # Dropout (eval) + ReLU

    h = jnp.dot(h.astype(w3_ref.dtype), w3_ref[...],
                preferred_element_type=jnp.float32) + b3_ref[...]
    h = jnp.maximum(h, 0.0)                                   # Dropout (eval) + ReLU

    h = jnp.dot(h.astype(w4_ref.dtype), w4_ref[...],
                preferred_element_type=jnp.float32) + b4_ref[...]
    # Lane-dense (block_b, 128) store; padded columns are sliced off outside.
    o_ref[...] = jax.nn.sigmoid(h)                            # Sigmoid


@functools.partial(jax.jit, static_argnames=("block_b", "matmul_dtype"))
def deepbsl_forward(x, params, *, block_b=512, matmul_dtype=jnp.bfloat16):
    """x: [B, F] float32. params: dict of w1..w4 ([in,out]) and b1..b4 ([1,out])."""
    B, F = x.shape

    # Effective batch tile: multiple of 128, never larger than the (padded) batch.
    block_b = max(128, min(block_b, _round_up(B, 128)))
    B_pad = _round_up(B, block_b)
    if B_pad != B:
        x = jnp.pad(x, ((0, B_pad - B), (0, 0)))

    # Matmul operands in bf16 (halved DMA bytes, native MXU rate); biases f32.
    xc = x.astype(matmul_dtype)
    w1 = params["w1"].astype(matmul_dtype)
    w2 = params["w2"].astype(matmul_dtype)
    w3 = params["w3"].astype(matmul_dtype)
    # Pad the final layer to 128 output columns (zero columns -> sliced off).
    w4 = jnp.pad(params["w4"], ((0, 0), (0, OUT_PAD - OUT))).astype(matmul_dtype)
    b1, b2, b3 = params["b1"], params["b2"], params["b3"]
    b4 = jnp.pad(params["b4"], ((0, 0), (0, OUT_PAD - OUT)))

    grid = (B_pad // block_b,)

    # Weights/biases are small (<= 128x128) -> keep whole arrays resident
    # per step via constant index maps (no re-DMA across grid steps).
    def const_spec(shape):
        return pl.BlockSpec(shape, lambda i: (0,) * len(shape))

    out = pl.pallas_call(
        _mlp_kernel,
        out_shape=jax.ShapeDtypeStruct((B_pad, OUT_PAD), jnp.float32),
        grid=grid,
        in_specs=[
            pl.BlockSpec((block_b, F), lambda i: (i, 0)),      # x tile
            const_spec(w1.shape), const_spec(b1.shape),
            const_spec(w2.shape), const_spec(b2.shape),
            const_spec(w3.shape), const_spec(b3.shape),
            const_spec(w4.shape), const_spec(b4.shape),
        ],
        out_specs=pl.BlockSpec((block_b, OUT_PAD), lambda i: (i, 0)),
        compiler_params=pltpu.CompilerParams(
            dimension_semantics=("parallel",)),
    )(xc, w1, b1, w2, b2, w3, b3, w4, b4)

    return out[:B, :OUT]


def init_params(key, num_feature):
    """Deterministic init mirroring nn.Linear default (uniform +/- 1/sqrt(fan_in))."""
    dims = [(num_feature, HIDDEN), (HIDDEN, HIDDEN), (HIDDEN, HIDDEN), (HIDDEN, OUT)]
    params = {}
    for idx, (fan_in, fan_out) in enumerate(dims, start=1):
        key, kw, kb = jax.random.split(key, 3)
        bound = 1.0 / jnp.sqrt(fan_in)
        params[f"w{idx}"] = jax.random.uniform(
            kw, (fan_in, fan_out), jnp.float32, -bound, bound)
        params[f"b{idx}"] = jax.random.uniform(
            kb, (1, fan_out), jnp.float32, -bound, bound)
    return params


def reference_forward(x, params, matmul_dtype=jnp.bfloat16):
    """JAX reference with identical bf16-operand / f32-accumulate numerics."""
    def mm(a, w):
        return jnp.dot(a.astype(matmul_dtype), w.astype(matmul_dtype),
                       preferred_element_type=jnp.float32)
    h = jnp.maximum(mm(x, params["w1"]) + params["b1"], 0.0)
    h = jnp.maximum(mm(h, params["w2"]) + params["b2"], 0.0)
    h = jnp.maximum(mm(h, params["w3"]) + params["b3"], 0.0)
    return jax.nn.sigmoid(mm(h, params["w4"]) + params["b4"])


if __name__ == "__main__":
    NUM_FEATURE = 32   # config['num_feature']
    BATCH = 8          # small demo batch; padded internally to a 128-row tile

    key = jax.random.PRNGKey(0)
    key, kx = jax.random.split(key)
    x = jax.random.normal(kx, (BATCH, NUM_FEATURE), jnp.float32)
    params = init_params(key, NUM_FEATURE)

    out = deepbsl_forward(x, params)
    out = jax.block_until_ready(out)

    ref = reference_forward(x, params)
    assert out.shape == (BATCH, OUT)
    assert jnp.allclose(out, ref, atol=2e-3, rtol=2e-3), "mismatch vs JAX reference"

    print("KERNEL_OK")
</pallas_src>

<mosaic_0001>
module attributes {stable_mosaic.version = 11 : i64} {
  func.func @_mlp_kernel(%arg0: i32, %arg1: memref<128x32xbf16, #tpu.memory_space<vmem>>, %arg2: memref<32x128xbf16, #tpu.memory_space<vmem>>, %arg3: memref<1x128xf32, #tpu.memory_space<vmem>>, %arg4: memref<128x128xbf16, #tpu.memory_space<vmem>>, %arg5: memref<1x128xf32, #tpu.memory_space<vmem>>, %arg6: memref<128x128xbf16, #tpu.memory_space<vmem>>, %arg7: memref<1x128xf32, #tpu.memory_space<vmem>>, %arg8: memref<128x128xbf16, #tpu.memory_space<vmem>>, %arg9: memref<1x128xf32, #tpu.memory_space<vmem>>, %arg10: memref<128x128xf32, #tpu.memory_space<vmem>>) attributes {dimension_semantics = [#tpu.dimension_semantics<parallel>], iteration_bounds = array<i64: 1>, scalar_prefetch = 0 : i64, scratch_operands = 0 : i64, tpu.core_type = #tpu.core_type<tc>, window_params = [{transform_indices = @transform_0, window_bounds = array<i64: 128, 32>}, {pipeline_mode = #tpu.pipeline_mode<synchronous>, transform_indices = @transform_1, window_bounds = array<i64: 32, 128>}, {pipeline_mode = #tpu.pipeline_mode<synchronous>, transform_indices = @transform_2, window_bounds = array<i64: 1, 128>}, {pipeline_mode = #tpu.pipeline_mode<synchronous>, transform_indices = @transform_3, window_bounds = array<i64: 128, 128>}, {pipeline_mode = #tpu.pipeline_mode<synchronous>, transform_indices = @transform_4, window_bounds = array<i64: 1, 128>}, {pipeline_mode = #tpu.pipeline_mode<synchronous>, transform_indices = @transform_5, window_bounds = array<i64: 128, 128>}, {pipeline_mode = #tpu.pipeline_mode<synchronous>, transform_indices = @transform_6, window_bounds = array<i64: 1, 128>}, {pipeline_mode = #tpu.pipeline_mode<synchronous>, transform_indices = @transform_7, window_bounds = array<i64: 128, 128>}, {pipeline_mode = #tpu.pipeline_mode<synchronous>, transform_indices = @transform_8, window_bounds = array<i64: 1, 128>}, {transform_indices = @transform_9, window_bounds = array<i64: 128, 128>}]} {
    %c0 = arith.constant 0 : index
    %c0_0 = arith.constant 0 : index
    %0 = vector.load %arg1[%c0, %c0_0] : memref<128x32xbf16, #tpu.memory_space<vmem>>, vector<128x32xbf16>
    %c0_1 = arith.constant 0 : index
    %c0_2 = arith.constant 0 : index
    %1 = vector.load %arg2[%c0_1, %c0_2] : memref<32x128xbf16, #tpu.memory_space<vmem>>, vector<32x128xbf16>
    %cst = arith.constant dense<0.000000e+00> : vector<128x128xf32>
    %2 = tpu.matmul %0, %1, %cst {dimension_numbers = #tpu.dot_dimension_numbers<[1], [0], [0], [1], [0, 0, 1, 1], [], []>} : vector<128x32xbf16>, vector<32x128xbf16>, vector<128x128xf32> -> vector<128x128xf32>
    %c0_3 = arith.constant 0 : index
    %c0_4 = arith.constant 0 : index
    %3 = vector.load %arg3[%c0_3, %c0_4] : memref<1x128xf32, #tpu.memory_space<vmem>>, vector<1x128xf32>
    %4 = vector.broadcast %3 : vector<1x128xf32> to vector<128x128xf32>
    %5 = arith.addf %2, %4 : vector<128x128xf32>
    %cst_5 = arith.constant 0.000000e+00 : f32
    %6 = vector.broadcast %cst_5 : f32 to vector<128x128xf32>
    %7 = arith.maximumf %5, %6 : vector<128x128xf32>
    %8 = arith.truncf %7 : vector<128x128xf32> to vector<128x128xbf16>
    %c0_6 = arith.constant 0 : index
    %c0_7 = arith.constant 0 : index
    %9 = vector.load %arg4[%c0_6, %c0_7] : memref<128x128xbf16, #tpu.memory_space<vmem>>, vector<128x128xbf16>
    %cst_8 = arith.constant dense<0.000000e+00> : vector<128x128xf32>
    %10 = tpu.matmul %8, %9, %cst_8 {dimension_numbers = #tpu.dot_dimension_numbers<[1], [0], [0], [1], [0, 0, 1, 1], [], []>} : vector<128x128xbf16>, vector<128x128xbf16>, vector<128x128xf32> -> vector<128x128xf32>
    %c0_9 = arith.constant 0 : index
    %c0_10 = arith.constant 0 : index
    %11 = vector.load %arg5[%c0_9, %c0_10] : memref<1x128xf32, #tpu.memory_space<vmem>>, vector<1x128xf32>
    %12 = vector.broadcast %11 : vector<1x128xf32> to vector<128x128xf32>
    %13 = arith.addf %10, %12 : vector<128x128xf32>
    %cst_11 = arith.constant 0.000000e+00 : f32
    %14 = vector.broadcast %cst_11 : f32 to vector<128x128xf32>
    %15 = arith.maximumf %13, %14 : vector<128x128xf32>
    %16 = arith.truncf %15 : vector<128x128xf32> to vector<128x128xbf16>
    %c0_12 = arith.constant 0 : index
    %c0_13 = arith.constant 0 : index
    %17 = vector.load %arg6[%c0_12, %c0_13] : memref<128x128xbf16, #tpu.memory_space<vmem>>, vector<128x128xbf16>
    %cst_14 = arith.constant dense<0.000000e+00> : vector<128x128xf32>
    %18 = tpu.matmul %16, %17, %cst_14 {dimension_numbers = #tpu.dot_dimension_numbers<[1], [0], [0], [1], [0, 0, 1, 1], [], []>} : vector<128x128xbf16>, vector<128x128xbf16>, vector<128x128xf32> -> vector<128x128xf32>
    %c0_15 = arith.constant 0 : index
    %c0_16 = arith.constant 0 : index
    %19 = vector.load %arg7[%c0_15, %c0_16] : memref<1x128xf32, #tpu.memory_space<vmem>>, vector<1x128xf32>
    %20 = vector.broadcast %19 : vector<1x128xf32> to vector<128x128xf32>
    %21 = arith.addf %18, %20 : vector<128x128xf32>
    %cst_17 = arith.constant 0.000000e+00 : f32
    %22 = vector.broadcast %cst_17 : f32 to vector<128x128xf32>
    %23 = arith.maximumf %21, %22 : vector<128x128xf32>
    %24 = arith.truncf %23 : vector<128x128xf32> to vector<128x128xbf16>
    %c0_18 = arith.constant 0 : index
    %c0_19 = arith.constant 0 : index
    %25 = vector.load %arg8[%c0_18, %c0_19] : memref<128x128xbf16, #tpu.memory_space<vmem>>, vector<128x128xbf16>
    %cst_20 = arith.constant dense<0.000000e+00> : vector<128x128xf32>
    %26 = tpu.matmul %24, %25, %cst_20 {dimension_numbers = #tpu.dot_dimension_numbers<[1], [0], [0], [1], [0, 0, 1, 1], [], []>} : vector<128x128xbf16>, vector<128x128xbf16>, vector<128x128xf32> -> vector<128x128xf32>
    %c0_21 = arith.constant 0 : index
    %c0_22 = arith.constant 0 : index
    %27 = vector.load %arg9[%c0_21, %c0_22] : memref<1x128xf32, #tpu.memory_space<vmem>>, vector<1x128xf32>
    %28 = vector.broadcast %27 : vector<1x128xf32> to vector<128x128xf32>
    %29 = arith.addf %26, %28 : vector<128x128xf32>
    %30 = arith.negf %29 : vector<128x128xf32>
    %31 = math.exp %30 : vector<128x128xf32>
    %cst_23 = arith.constant 1.000000e+00 : f32
    %32 = vector.broadcast %cst_23 : f32 to vector<128x128xf32>
    %33 = arith.addf %32, %31 : vector<128x128xf32>
    %34 = arith.divf %32, %33 : vector<128x128xf32>
    %c0_24 = arith.constant 0 : index
    %c0_25 = arith.constant 0 : index
    %35 = vector.load %arg10[%c0_24, %c0_25] : memref<128x128xf32, #tpu.memory_space<vmem>>, vector<128x128xf32>
    tpu.vector_store %arg10[%c0_24, %c0_25], %34 {strides = array<i32>} : memref<128x128xf32, #tpu.memory_space<vmem>>, vector<128x128xf32>,
    return
  }
  func.func @transform_0(%arg0: i32) -> (i32, i32) {
    %c0_i32 = arith.constant 0 : i32
    %c0_i32_0 = arith.constant 0 : i32
    return %arg0, %c0_i32 : i32, i32
  }
  func.func @transform_1(%arg0: i32) -> (i32, i32) {
    %c0_i32 = arith.constant 0 : i32
    %c0_i32_0 = arith.constant 0 : i32
    %c0_i32_1 = arith.constant 0 : i32
    return %c0_i32, %c0_i32_0 : i32, i32
  }
  func.func @transform_2(%arg0: i32) -> (i32, i32) {
    %c0_i32 = arith.constant 0 : i32
    %c0_i32_0 = arith.constant 0 : i32
    %c0_i32_1 = arith.constant 0 : i32
    return %c0_i32, %c0_i32_0 : i32, i32
  }
  func.func @transform_3(%arg0: i32) -> (i32, i32) {
    %c0_i32 = arith.constant 0 : i32
    %c0_i32_0 = arith.constant 0 : i32
    %c0_i32_1 = arith.constant 0 : i32
    return %c0_i32, %c0_i32_0 : i32, i32
  }
  func.func @transform_4(%arg0: i32) -> (i32, i32) {
    %c0_i32 = arith.constant 0 : i32
    %c0_i32_0 = arith.constant 0 : i32
    %c0_i32_1 = arith.constant 0 : i32
    return %c0_i32, %c0_i32_0 : i32, i32
  }
  func.func @transform_5(%arg0: i32) -> (i32, i32) {
    %c0_i32 = arith.constant 0 : i32
    %c0_i32_0 = arith.constant 0 : i32
    %c0_i32_1 = arith.constant 0 : i32
    return %c0_i32, %c0_i32_0 : i32, i32
  }
  func.func @transform_6(%arg0: i32) -> (i32, i32) {
    %c0_i32 = arith.constant 0 : i32
    %c0_i32_0 = arith.constant 0 : i32
    %c0_i32_1 = arith.constant 0 : i32
    return %c0_i32, %c0_i32_0 : i32, i32
  }
  func.func @transform_7(%arg0: i32) -> (i32, i32) {
    %c0_i32 = arith.constant 0 : i32
    %c0_i32_0 = arith.constant 0 : i32
    %c0_i32_1 = arith.constant 0 : i32
    return %c0_i32, %c0_i32_0 : i32, i32
  }
  func.func @transform_8(%arg0: i32) -> (i32, i32) {
    %c0_i32 = arith.constant 0 : i32
    %c0_i32_0 = arith.constant 0 : i32
    %c0_i32_1 = arith.constant 0 : i32
    return %c0_i32, %c0_i32_0 : i32, i32
  }
  func.func @transform_9(%arg0: i32) -> (i32, i32) {
    %c0_i32 = arith.constant 0 : i32
    %c0_i32_0 = arith.constant 0 : i32
    return %arg0, %c0_i32 : i32, i32
  }
}

</mosaic_0001>

<llo_original>
// kernel: deepbsl_forward.1
$region0: #{deepbsl_forward.1}
  #allocation0 [shape = 'u32[]', space=smem, size = 0x4, offset = 0x4, fixed_abs, tag = 'smem constant byte address 0x4 - core index']
  #allocation1 [shape = 'u32[72,128]{1,0:T(1,128)}', space=vmem, size = 0x9000, scoped, tag = 'internal scratch']
  %s0 = inlined_call_operand.vmem [shape: bf16[128,32], index: 0, kind: input, shape index: {}]
  %s1 = inlined_call_operand.vmem [shape: bf16[32,128], index: 1, kind: input, shape index: {}]
  %s2 = inlined_call_operand.vmem [shape: f32[1,128], index: 2, kind: input, shape index: {}]
  %s3 = inlined_call_operand.vmem [shape: bf16[128,128], index: 3, kind: input, shape index: {}]
  %s4 = inlined_call_operand.vmem [shape: f32[1,128], index: 4, kind: input, shape index: {}]
  %s5 = inlined_call_operand.vmem [shape: bf16[128,128], index: 5, kind: input, shape index: {}]
  %s6 = inlined_call_operand.vmem [shape: f32[1,128], index: 6, kind: input, shape index: {}]
  %s7 = inlined_call_operand.vmem [shape: bf16[128,128], index: 7, kind: input, shape index: {}]
  %s8 = inlined_call_operand.vmem [shape: f32[1,128], index: 8, kind: input, shape index: {}]
  %s9 = inlined_call_operand.vmem [shape: f32[128,128], index: 9, kind: output, shape index: {}]
  %s10 = sld [smem:[#allocation0]]
  $region46: #{deepbsl_forward.1} parent=0
    _
  %s12 = ssub.s32 1, %s10
  %s13 = scalar_select 0, %s12, %s10
  // Predicated region
  $region2: #{deepbsl_forward.1} parent=0 // pred_check
    _
  $region3: #{deepbsl_forward.1} parent=0 // pred_check_branch
    %15 = sbr.rel (0) target = $region5
  $region4: #{deepbsl_forward.1} parent=0 // pred_region
    _
  $region5: #{deepbsl_forward.1} parent=0 // pred_fallthru
    _
  // Predicated region
  $region6: #{deepbsl_forward.1} parent=0 // pred_check
    _
  $region7: #{deepbsl_forward.1} parent=0 // pred_check_branch
    %17 = sbr.rel (0) target = $region9
  $region8: #{deepbsl_forward.1} parent=0 // pred_region
    _
  $region9: #{deepbsl_forward.1} parent=0 // pred_fallthru
    _
  // Predicated region
  $region10: #{deepbsl_forward.1} parent=0 // pred_check
    _
  $region11: #{deepbsl_forward.1} parent=0 // pred_check_branch
    %19 = sbr.rel (0) target = $region13
  $region12: #{deepbsl_forward.1} parent=0 // pred_region
    _
  $region13: #{deepbsl_forward.1} parent=0 // pred_fallthru
    _
  // Predicated region
  $region14: #{deepbsl_forward.1} parent=0 // pred_check
    _
  $region15: #{deepbsl_forward.1} parent=0 // pred_check_branch
    %21 = sbr.rel (0) target = $region17
  $region16: #{deepbsl_forward.1} parent=0 // pred_region
    _
  $region17: #{deepbsl_forward.1} parent=0 // pred_fallthru
    _
  // Predicated region
  $region18: #{deepbsl_forward.1} parent=0 // pred_check
    _
  $region19: #{deepbsl_forward.1} parent=0 // pred_check_branch
    %23 = sbr.rel (0) target = $region21
  $region20: #{deepbsl_forward.1} parent=0 // pred_region
    _
  $region21: #{deepbsl_forward.1} parent=0 // pred_fallthru
    _
  // Predicated region
  $region22: #{deepbsl_forward.1} parent=0 // pred_check
    _
  $region23: #{deepbsl_forward.1} parent=0 // pred_check_branch
    %25 = sbr.rel (0) target = $region25
  $region24: #{deepbsl_forward.1} parent=0 // pred_region
    _
  $region25: #{deepbsl_forward.1} parent=0 // pred_fallthru
    _
  // Predicated region
  $region26: #{deepbsl_forward.1} parent=0 // pred_check
    _
  $region27: #{deepbsl_forward.1} parent=0 // pred_check_branch
    %27 = sbr.rel (0) target = $region29
  $region28: #{deepbsl_forward.1} parent=0 // pred_region
    _
  $region29: #{deepbsl_forward.1} parent=0 // pred_fallthru
    _
  // Predicated region
  $region30: #{deepbsl_forward.1} parent=0 // pred_check
    _
  $region31: #{deepbsl_forward.1} parent=0 // pred_check_branch
    %29 = sbr.rel (0) target = $region33
  $region32: #{deepbsl_forward.1} parent=0 // pred_region
    _
  $region33: #{deepbsl_forward.1} parent=0 // pred_fallthru
    _
  // Predicated region
  $region34: #{deepbsl_forward.1} parent=0 // pred_check
    _
  $region35: #{deepbsl_forward.1} parent=0 // pred_check_branch
    %31 = sbr.rel (0) target = $region37
  $region36: #{deepbsl_forward.1} parent=0 // pred_region
    _
  $region37: #{deepbsl_forward.1} parent=0 // pred_fallthru
    _
  %v33 = vld [vmem:[%s0] sm:$0xf]
  %v34 = vld [vmem:[%s0 + $0x4] sm:$0xf]
  %v35 = vld [vmem:[%s0 + $0x8] sm:$0xf]
  %v36 = vld [vmem:[%s0 + $0xc] sm:$0xf]
  %v37 = vld [vmem:[%s0 + $0x10] sm:$0xf]
  %v38 = vld [vmem:[%s0 + $0x14] sm:$0xf]
  %v39 = vld [vmem:[%s0 + $0x18] sm:$0xf]
  %v40 = vld [vmem:[%s0 + $0x1c] sm:$0xf]
  %v41 = vld [vmem:[%s0 + $0x20] sm:$0xf]
  %v42 = vld [vmem:[%s0 + $0x24] sm:$0xf]
  %v43 = vld [vmem:[%s0 + $0x28] sm:$0xf]
  %v44 = vld [vmem:[%s0 + $0x2c] sm:$0xf]
  %v45 = vld [vmem:[%s0 + $0x30] sm:$0xf]
  %v46 = vld [vmem:[%s0 + $0x34] sm:$0xf]
  %v47 = vld [vmem:[%s0 + $0x38] sm:$0xf]
  %v48 = vld [vmem:[%s0 + $0x3c] sm:$0xf]
  %v49 = vld [vmem:[%s1] sm:$0xf]
  %v50 = vld [vmem:[%s1 + $0x4] sm:$0xf]
  %v51 = vld [vmem:[%s1 + $0x8] sm:$0xf]
  %v52 = vld [vmem:[%s1 + $0xc] sm:$0xf]
  %v53 = vld [vmem:[%s2] sm:$0x1]
  %v55 = vperm.slane %v53, 0
  %v73 = vunpack.c.l.b16 %v33
  %v74 = vunpack.c.l.b16 %v34
  %v75 = vunpack.c.l.b16 %v35
  %v76 = vunpack.c.l.b16 %v36
  %v77 = vunpack.c.l.b16 %v37
  %v78 = vunpack.c.l.b16 %v38
  %v79 = vunpack.c.l.b16 %v39
  %v80 = vunpack.c.l.b16 %v40
  %v81 = vunpack.c.l.b16 %v41
  %v82 = vunpack.c.l.b16 %v42
  %v83 = vunpack.c.l.b16 %v43
  %v84 = vunpack.c.l.b16 %v44
  %v85 = vunpack.c.l.b16 %v45
  %v86 = vunpack.c.l.b16 %v46
  %v87 = vunpack.c.l.b16 %v47
  %v88 = vunpack.c.l.b16 %v48
  %v89 = vpack.c.b16 %v74, %v73
  %v90 = vpack.c.b16 %v76, %v75
  %v91 = vpack.c.b16 %v78, %v77
  %v92 = vpack.c.b16 %v80, %v79
  %v93 = vpack.c.b16 %v82, %v81
  %v94 = vpack.c.b16 %v84, %v83
  %v95 = vpack.c.b16 %v86, %v85
  %v96 = vpack.c.b16 %v88, %v87
  %v101 = vunpack.c.l.b16 %v49
  %v102 = vunpack.c.l.b16 %v50
  %v103 = vunpack.c.l.b16 %v51
  %v104 = vunpack.c.l.b16 %v52
  %v105 = vpack.c.b16 %v102, %v101
  %v106 = vpack.c.b16 %v104, %v103
  %vm109 = vcmask 261120
  %v111 = vsel %vm109, %v89, 0
  %v114 = vsel %vm109, %v90, 0
  %v117 = vsel %vm109, %v91, 0
  %v120 = vsel %vm109, %v92, 0
  %v123 = vsel %vm109, %v93, 0
  %v126 = vsel %vm109, %v94, 0
  %v129 = vsel %vm109, %v95, 0
  %v132 = vsel %vm109, %v96, 0
  %134 = vmatpush.bf16.msra.mxu0 0
  %135 = vmatpush.bf16.msra.mxu0 0
  %136 = vmatpush.bf16.msra.mxu0 0
  %137 = vmatpush.bf16.msra.mxu0 0
  %138 = vmatpush.bf16.msra.mxu0 0
  %139 = vmatpush.bf16.msra.mxu0 0
  %140 = vmatpush.bf16.msra.mxu0 %v106
  %141 = vmatpush.bf16.msra.mxu0 %v105
  %142 = vmatmul.bf16.gmra.mxu0 %v111
  %v143 = vpop.f32.mrf.mxu0
  %v144 = vadd.f32 %v55, %v143
  %v145 = vpop.f32.mrf.mxu0
  %v146 = vadd.f32 %v55, %v145
  %147 = vmatmul.bf16.gmra.mxu0 %v114
  %v148 = vpop.f32.mrf.mxu0
  %v149 = vadd.f32 %v55, %v148
  %v150 = vpop.f32.mrf.mxu0
  %v151 = vadd.f32 %v55, %v150
  %152 = vmatmul.bf16.gmra.mxu0 %v117
  %v153 = vpop.f32.mrf.mxu0
  %v154 = vadd.f32 %v55, %v153
  %v155 = vpop.f32.mrf.mxu0
  %v156 = vadd.f32 %v55, %v155
  %157 = vmatmul.bf16.gmra.mxu0 %v120
  %v158 = vpop.f32.mrf.mxu0
  %v159 = vadd.f32 %v55, %v158
  %v160 = vpop.f32.mrf.mxu0
  %v161 = vadd.f32 %v55, %v160
  %162 = vmatmul.bf16.gmra.mxu0 %v123
  %v163 = vpop.f32.mrf.mxu0
  %v164 = vadd.f32 %v55, %v163
  %v165 = vpop.f32.mrf.mxu0
  %v166 = vadd.f32 %v55, %v165
  %167 = vmatmul.bf16.gmra.mxu0 %v126
  %v168 = vpop.f32.mrf.mxu0
  %v169 = vadd.f32 %v55, %v168
  %v170 = vpop.f32.mrf.mxu0
  %v171 = vadd.f32 %v55, %v170
  %172 = vmatmul.bf16.gmra.mxu0 %v129
  %v173 = vpop.f32.mrf.mxu0
  %v174 = vadd.f32 %v55, %v173
  %v175 = vpop.f32.mrf.mxu0
  %v176 = vadd.f32 %v55, %v175
  %177 = vmatmul.bf16.gmra.mxu0 %v132
  %v178 = vpop.f32.mrf.mxu0
  %v179 = vadd.f32 %v55, %v178
  %v180 = vpop.f32.mrf.mxu0
  %v181 = vadd.f32 %v55, %v180
  %182 = vdwg.mxu0
  %v183 = vmax.f32 %v144, 0.0
  %v184 = vmax.f32 %v146, 0.0
  %v185 = vmax.f32 %v149, 0.0
  %v186 = vmax.f32 %v151, 0.0
  %v187 = vmax.f32 %v154, 0.0
  %v188 = vmax.f32 %v156, 0.0
  %v189 = vmax.f32 %v159, 0.0
  %v190 = vmax.f32 %v161, 0.0
  %v191 = vmax.f32 %v164, 0.0
  %v192 = vmax.f32 %v166, 0.0
  %v193 = vmax.f32 %v169, 0.0
  %v194 = vmax.f32 %v171, 0.0
  %v195 = vmax.f32 %v174, 0.0
  %v196 = vmax.f32 %v176, 0.0
  %v197 = vmax.f32 %v179, 0.0
  %v198 = vmax.f32 %v181, 0.0
  %v199 = vpack.c.bf16 %v184, %v183
  %v200 = vpack.c.bf16 %v186, %v185
  %v201 = vpack.c.bf16 %v188, %v187
  %v202 = vpack.c.bf16 %v190, %v189
  %v203 = vpack.c.bf16 %v192, %v191
  %v204 = vpack.c.bf16 %v194, %v193
  %v205 = vpack.c.bf16 %v196, %v195
  %v206 = vpack.c.bf16 %v198, %v197
  %v207 = vld [vmem:[%s3] sm:$0xf]
  %v208 = vld [vmem:[%s3 + $0x4] sm:$0xf]
  %v209 = vld [vmem:[%s3 + $0x8] sm:$0xf]
  %v210 = vld [vmem:[%s3 + $0xc] sm:$0xf]
  %v211 = vld [vmem:[%s3 + $0x10] sm:$0xf]
  %v212 = vld [vmem:[%s3 + $0x14] sm:$0xf]
  %v213 = vld [vmem:[%s3 + $0x18] sm:$0xf]
  %v214 = vld [vmem:[%s3 + $0x1c] sm:$0xf]
  %v215 = vld [vmem:[%s3 + $0x20] sm:$0xf]
  %v216 = vld [vmem:[%s3 + $0x24] sm:$0xf]
  %v217 = vld [vmem:[%s3 + $0x28] sm:$0xf]
  %v218 = vld [vmem:[%s3 + $0x2c] sm:$0xf]
  %v219 = vld [vmem:[%s3 + $0x30] sm:$0xf]
  %v220 = vld [vmem:[%s3 + $0x34] sm:$0xf]
  %v221 = vld [vmem:[%s3 + $0x38] sm:$0xf]
  %v222 = vld [vmem:[%s3 + $0x3c] sm:$0xf]
  %v223 = vld [vmem:[%s4] sm:$0x1]
  %v225 = vperm.slane %v223, 0
  %v243 = vunpack.c.l.b16 %v207
  %v244 = vunpack.c.l.b16 %v208
  %v245 = vunpack.c.l.b16 %v209
  %v246 = vunpack.c.l.b16 %v210
  %v247 = vunpack.c.l.b16 %v211
  %v248 = vunpack.c.l.b16 %v212
  %v249 = vunpack.c.l.b16 %v213
  %v250 = vunpack.c.l.b16 %v214
  %v251 = vunpack.c.l.b16 %v215
  %v252 = vunpack.c.l.b16 %v216
  %v253 = vunpack.c.l.b16 %v217
  %v254 = vunpack.c.l.b16 %v218
  %v255 = vunpack.c.l.b16 %v219
  %v256 = vunpack.c.l.b16 %v220
  %v257 = vunpack.c.l.b16 %v221
  %v258 = vunpack.c.l.b16 %v222
  %v259 = vpack.c.b16 %v244, %v243
  %v260 = vpack.c.b16 %v246, %v245
  %v261 = vpack.c.b16 %v248, %v247
  %v262 = vpack.c.b16 %v250, %v249
  %v263 = vpack.c.b16 %v252, %v251
  %v264 = vpack.c.b16 %v254, %v253
  %v265 = vpack.c.b16 %v256, %v255
  %v266 = vpack.c.b16 %v258, %v257
  %275 = vmatpush.bf16.msra.mxu0 %v266
  %276 = vmatpush.bf16.msra.mxu0 %v265
  %277 = vmatpush.bf16.msra.mxu0 %v264
  %278 = vmatpush.bf16.msra.mxu0 %v263
  %279 = vmatpush.bf16.msra.mxu0 %v262
  %280 = vmatpush.bf16.msra.mxu0 %v261
  %281 = vmatpush.bf16.msra.mxu0 %v260
  %282 = vmatpush.bf16.msra.mxu0 %v259
  %283 = vmatmul.bf16.gmra.mxu0 %v199
  %v284 = vpop.f32.mrf.mxu0
  %v285 = vadd.f32 %v225, %v284
  %v286 = vpop.f32.mrf.mxu0
  %v287 = vadd.f32 %v225, %v286
  %288 = vmatmul.bf16.gmra.mxu0 %v200
  %v289 = vpop.f32.mrf.mxu0
  %v290 = vadd.f32 %v225, %v289
  %v291 = vpop.f32.mrf.mxu0
  %v292 = vadd.f32 %v225, %v291
  %293 = vmatmul.bf16.gmra.mxu0 %v201
  %v294 = vpop.f32.mrf.mxu0
  %v295 = vadd.f32 %v225, %v294
  %v296 = vpop.f32.mrf.mxu0
  %v297 = vadd.f32 %v225, %v296
  %298 = vmatmul.bf16.gmra.mxu0 %v202
  %v299 = vpop.f32.mrf.mxu0
  %v300 = vadd.f32 %v225, %v299
  %v301 = vpop.f32.mrf.mxu0
  %v302 = vadd.f32 %v225, %v301
  %303 = vmatmul.bf16.gmra.mxu0 %v203
  %v304 = vpop.f32.mrf.mxu0
  %v305 = vadd.f32 %v225, %v304
  %v306 = vpop.f32.mrf.mxu0
  %v307 = vadd.f32 %v225, %v306
  %308 = vmatmul.bf16.gmra.mxu0 %v204
  %v309 = vpop.f32.mrf.mxu0
  %v310 = vadd.f32 %v225, %v309
  %v311 = vpop.f32.mrf.mxu0
  %v312 = vadd.f32 %v225, %v311
  %313 = vmatmul.bf16.gmra.mxu0 %v205
  %v314 = vpop.f32.mrf.mxu0
  %v315 = vadd.f32 %v225, %v314
  %v316 = vpop.f32.mrf.mxu0
  %v317 = vadd.f32 %v225, %v316
  %318 = vmatmul.bf16.gmra.mxu0 %v206
  %v319 = vpop.f32.mrf.mxu0
  %v320 = vadd.f32 %v225, %v319
  %v321 = vpop.f32.mrf.mxu0
  %v322 = vadd.f32 %v225, %v321
  %323 = vdwg.mxu0
  %v324 = vmax.f32 %v285, 0.0
  %v325 = vmax.f32 %v287, 0.0
  %v326 = vmax.f32 %v290, 0.0
  %v327 = vmax.f32 %v292, 0.0
  %v328 = vmax.f32 %v295, 0.0
  %v329 = vmax.f32 %v297, 0.0
  %v330 = vmax.f32 %v300, 0.0
  %v331 = vmax.f32 %v302, 0.0
  %v332 = vmax.f32 %v305, 0.0
  %v333 = vmax.f32 %v307, 0.0
  %v334 = vmax.f32 %v310, 0.0
  %v335 = vmax.f32 %v312, 0.0
  %v336 = vmax.f32 %v315, 0.0
  %v337 = vmax.f32 %v317, 0.0
  %v338 = vmax.f32 %v320, 0.0
  %v339 = vmax.f32 %v322, 0.0
  %v340 = vpack.c.bf16 %v325, %v324
  %v341 = vpack.c.bf16 %v327, %v326
  %v342 = vpack.c.bf16 %v329, %v328
  %v343 = vpack.c.bf16 %v331, %v330
  %v344 = vpack.c.bf16 %v333, %v332
  %v345 = vpack.c.bf16 %v335, %v334
  %v346 = vpack.c.bf16 %v337, %v336
  %v347 = vpack.c.bf16 %v339, %v338
  %v348 = vld [vmem:[%s5] sm:$0xf]
  %v349 = vld [vmem:[%s5 + $0x4] sm:$0xf]
  %v350 = vld [vmem:[%s5 + $0x8] sm:$0xf]
  %v351 = vld [vmem:[%s5 + $0xc] sm:$0xf]
  %v352 = vld [vmem:[%s5 + $0x10] sm:$0xf]
  %v353 = vld [vmem:[%s5 + $0x14] sm:$0xf]
  %v354 = vld [vmem:[%s5 + $0x18] sm:$0xf]
  %v355 = vld [vmem:[%s5 + $0x1c] sm:$0xf]
  %v356 = vld [vmem:[%s5 + $0x20] sm:$0xf]
  %v357 = vld [vmem:[%s5 + $0x24] sm:$0xf]
  %v358 = vld [vmem:[%s5 + $0x28] sm:$0xf]
  %v359 = vld [vmem:[%s5 + $0x2c] sm:$0xf]
  %v360 = vld [vmem:[%s5 + $0x30] sm:$0xf]
  %v361 = vld [vmem:[%s5 + $0x34] sm:$0xf]
  %v362 = vld [vmem:[%s5 + $0x38] sm:$0xf]
  %v363 = vld [vmem:[%s5 + $0x3c] sm:$0xf]
  %v364 = vld [vmem:[%s6] sm:$0x1]
  %v366 = vperm.slane %v364, 0
  %v384 = vunpack.c.l.b16 %v348
  %v385 = vunpack.c.l.b16 %v349
  %v386 = vunpack.c.l.b16 %v350
  %v387 = vunpack.c.l.b16 %v351
  %v388 = vunpack.c.l.b16 %v352
  %v389 = vunpack.c.l.b16 %v353
  %v390 = vunpack.c.l.b16 %v354
  %v391 = vunpack.c.l.b16 %v355
  %v392 = vunpack.c.l.b16 %v356
  %v393 = vunpack.c.l.b16 %v357
  %v394 = vunpack.c.l.b16 %v358
  %v395 = vunpack.c.l.b16 %v359
  %v396 = vunpack.c.l.b16 %v360
  %v397 = vunpack.c.l.b16 %v361
  %v398 = vunpack.c.l.b16 %v362
  %v399 = vunpack.c.l.b16 %v363
  %v400 = vpack.c.b16 %v385, %v384
  %v401 = vpack.c.b16 %v387, %v386
  %v402 = vpack.c.b16 %v389, %v388
  %v403 = vpack.c.b16 %v391, %v390
  %v404 = vpack.c.b16 %v393, %v392
  %v405 = vpack.c.b16 %v395, %v394
  %v406 = vpack.c.b16 %v397, %v396
  %v407 = vpack.c.b16 %v399, %v398
  %416 = vmatpush.bf16.msra.mxu0 %v407
  %417 = vmatpush.bf16.msra.mxu0 %v406
  %418 = vmatpush.bf16.msra.mxu0 %v405
  %419 = vmatpush.bf16.msra.mxu0 %v404
  %420 = vmatpush.bf16.msra.mxu0 %v403
  %421 = vmatpush.bf16.msra.mxu0 %v402
  %422 = vmatpush.bf16.msra.mxu0 %v401
  %423 = vmatpush.bf16.msra.mxu0 %v400
  %424 = vmatmul.bf16.gmra.mxu0 %v340
  %v425 = vpop.f32.mrf.mxu0
  %v426 = vadd.f32 %v366, %v425
  %v427 = vpop.f32.mrf.mxu0
  %v428 = vadd.f32 %v366, %v427
  %429 = vmatmul.bf16.gmra.mxu0 %v341
  %v430 = vpop.f32.mrf.mxu0
  %v431 = vadd.f32 %v366, %v430
  %v432 = vpop.f32.mrf.mxu0
  %v433 = vadd.f32 %v366, %v432
  %434 = vmatmul.bf16.gmra.mxu0 %v342
  %v435 = vpop.f32.mrf.mxu0
  %v436 = vadd.f32 %v366, %v435
  %v437 = vpop.f32.mrf.mxu0
  %v438 = vadd.f32 %v366, %v437
  %439 = vmatmul.bf16.gmra.mxu0 %v343
  %v440 = vpop.f32.mrf.mxu0
  %v441 = vadd.f32 %v366, %v440
  %v442 = vpop.f32.mrf.mxu0
  %v443 = vadd.f32 %v366, %v442
  %444 = vmatmul.bf16.gmra.mxu0 %v344
  %v445 = vpop.f32.mrf.mxu0
  %v446 = vadd.f32 %v366, %v445
  %v447 = vpop.f32.mrf.mxu0
  %v448 = vadd.f32 %v366, %v447
  %449 = vmatmul.bf16.gmra.mxu0 %v345
  %v450 = vpop.f32.mrf.mxu0
  %v451 = vadd.f32 %v366, %v450
  %v452 = vpop.f32.mrf.mxu0
  %v453 = vadd.f32 %v366, %v452
  %454 = vmatmul.bf16.gmra.mxu0 %v346
  %v455 = vpop.f32.mrf.mxu0
  %v456 = vadd.f32 %v366, %v455
  %v457 = vpop.f32.mrf.mxu0
  %v458 = vadd.f32 %v366, %v457
  %459 = vmatmul.bf16.gmra.mxu0 %v347
  %v460 = vpop.f32.mrf.mxu0
  %v461 = vadd.f32 %v366, %v460
  %v462 = vpop.f32.mrf.mxu0
  %v463 = vadd.f32 %v366, %v462
  %464 = vdwg.mxu0
  %v465 = vmax.f32 %v426, 0.0
  %v466 = vmax.f32 %v428, 0.0
  %v467 = vmax.f32 %v431, 0.0
  %v468 = vmax.f32 %v433, 0.0
  %v469 = vmax.f32 %v436, 0.0
  %v470 = vmax.f32 %v438, 0.0
  %v471 = vmax.f32 %v441, 0.0
  %v472 = vmax.f32 %v443, 0.0
  %v473 = vmax.f32 %v446, 0.0
  %v474 = vmax.f32 %v448, 0.0
  %v475 = vmax.f32 %v451, 0.0
  %v476 = vmax.f32 %v453, 0.0
  %v477 = vmax.f32 %v456, 0.0
  %v478 = vmax.f32 %v458, 0.0
  %v479 = vmax.f32 %v461, 0.0
  %v480 = vmax.f32 %v463, 0.0
  %v481 = vpack.c.bf16 %v466, %v465
  %v482 = vpack.c.bf16 %v468, %v467
  %v483 = vpack.c.bf16 %v470, %v469
  %v484 = vpack.c.bf16 %v472, %v471
  %v485 = vpack.c.bf16 %v474, %v473
  %v486 = vpack.c.bf16 %v476, %v475
  %v487 = vpack.c.bf16 %v478, %v477
  %v488 = vpack.c.bf16 %v480, %v479
  %v489 = vld [vmem:[%s7] sm:$0xf]
  %v490 = vld [vmem:[%s7 + $0x4] sm:$0xf]
  %v491 = vld [vmem:[%s7 + $0x8] sm:$0xf]
  %v492 = vld [vmem:[%s7 + $0xc] sm:$0xf]
  %v493 = vld [vmem:[%s7 + $0x10] sm:$0xf]
  %v494 = vld [vmem:[%s7 + $0x14] sm:$0xf]
  %v495 = vld [vmem:[%s7 + $0x18] sm:$0xf]
  %v496 = vld [vmem:[%s7 + $0x1c] sm:$0xf]
  %v497 = vld [vmem:[%s7 + $0x20] sm:$0xf]
  %v498 = vld [vmem:[%s7 + $0x24] sm:$0xf]
  %v499 = vld [vmem:[%s7 + $0x28] sm:$0xf]
  %v500 = vld [vmem:[%s7 + $0x2c] sm:$0xf]
  %v501 = vld [vmem:[%s7 + $0x30] sm:$0xf]
  %v502 = vld [vmem:[%s7 + $0x34] sm:$0xf]
  %v503 = vld [vmem:[%s7 + $0x38] sm:$0xf]
  %v504 = vld [vmem:[%s7 + $0x3c] sm:$0xf]
  %v505 = vld [vmem:[%s8] sm:$0x1]
  %v507 = vperm.slane %v505, 0
  %v525 = vunpack.c.l.b16 %v489
  %v526 = vunpack.c.l.b16 %v490
  %v527 = vunpack.c.l.b16 %v491
  %v528 = vunpack.c.l.b16 %v492
  %v529 = vunpack.c.l.b16 %v493
  %v530 = vunpack.c.l.b16 %v494
  %v531 = vunpack.c.l.b16 %v495
  %v532 = vunpack.c.l.b16 %v496
  %v533 = vunpack.c.l.b16 %v497
  %v534 = vunpack.c.l.b16 %v498
  %v535 = vunpack.c.l.b16 %v499
  %v536 = vunpack.c.l.b16 %v500
  %v537 = vunpack.c.l.b16 %v501
  %v538 = vunpack.c.l.b16 %v502
  %v539 = vunpack.c.l.b16 %v503
  %v540 = vunpack.c.l.b16 %v504
  %v541 = vpack.c.b16 %v526, %v525
  %v542 = vpack.c.b16 %v528, %v527
  %v543 = vpack.c.b16 %v530, %v529
  %v544 = vpack.c.b16 %v532, %v531
  %v545 = vpack.c.b16 %v534, %v533
  %v546 = vpack.c.b16 %v536, %v535
  %v547 = vpack.c.b16 %v538, %v537
  %v548 = vpack.c.b16 %v540, %v539
  %557 = vmatpush.bf16.msra.mxu0 %v548
  %558 = vmatpush.bf16.msra.mxu0 %v547
  %559 = vmatpush.bf16.msra.mxu0 %v546
  %560 = vmatpush.bf16.msra.mxu0 %v545
  %561 = vmatpush.bf16.msra.mxu0 %v544
  %562 = vmatpush.bf16.msra.mxu0 %v543
  %563 = vmatpush.bf16.msra.mxu0 %v542
  %564 = vmatpush.bf16.msra.mxu0 %v541
  %565 = vmatmul.bf16.gmra.mxu0 %v481
  %v566 = vpop.f32.mrf.mxu0
  %v567 = vadd.f32 %v507, %v566
  %v568 = vpop.f32.mrf.mxu0
  %v569 = vadd.f32 %v507, %v568
  %570 = vmatmul.bf16.gmra.mxu0 %v482
  %v571 = vpop.f32.mrf.mxu0
  %v572 = vadd.f32 %v507, %v571
  %v573 = vpop.f32.mrf.mxu0
  %v574 = vadd.f32 %v507, %v573
  %575 = vmatmul.bf16.gmra.mxu0 %v483
  %v576 = vpop.f32.mrf.mxu0
  %v577 = vadd.f32 %v507, %v576
  %v578 = vpop.f32.mrf.mxu0
  %v579 = vadd.f32 %v507, %v578
  %580 = vmatmul.bf16.gmra.mxu0 %v484
  %v581 = vpop.f32.mrf.mxu0
  %v582 = vadd.f32 %v507, %v581
  %v583 = vpop.f32.mrf.mxu0
  %v584 = vadd.f32 %v507, %v583
  %585 = vmatmul.bf16.gmra.mxu0 %v485
  %v586 = vpop.f32.mrf.mxu0
  %v587 = vadd.f32 %v507, %v586
  %v588 = vpop.f32.mrf.mxu0
  %v589 = vadd.f32 %v507, %v588
  %590 = vmatmul.bf16.gmra.mxu0 %v486
  %v591 = vpop.f32.mrf.mxu0
  %v592 = vadd.f32 %v507, %v591
  %v593 = vpop.f32.mrf.mxu0
  %v594 = vadd.f32 %v507, %v593
  %595 = vmatmul.bf16.gmra.mxu0 %v487
  %v596 = vpop.f32.mrf.mxu0
  %v597 = vadd.f32 %v507, %v596
  %v598 = vpop.f32.mrf.mxu0
  %v599 = vadd.f32 %v507, %v598
  %600 = vmatmul.bf16.gmra.mxu0 %v488
  %v601 = vpop.f32.mrf.mxu0
  %v602 = vadd.f32 %v507, %v601
  %v603 = vpop.f32.mrf.mxu0
  %v604 = vadd.f32 %v507, %v603
  %605 = vdwg.mxu0
  %v606 = vxor.u32 %v567, 2147483648
  %v607 = vxor.u32 %v569, 2147483648
  %v608 = vxor.u32 %v572, 2147483648
  %v609 = vxor.u32 %v574, 2147483648
  %v610 = vxor.u32 %v577, 2147483648
  %v611 = vxor.u32 %v579, 2147483648
  %v612 = vxor.u32 %v582, 2147483648
  %v613 = vxor.u32 %v584, 2147483648
  %v614 = vxor.u32 %v587, 2147483648
  %v615 = vxor.u32 %v589, 2147483648
  %v616 = vxor.u32 %v592, 2147483648
  %v617 = vxor.u32 %v594, 2147483648
  %v618 = vxor.u32 %v597, 2147483648
  %v619 = vxor.u32 %v599, 2147483648
  %v620 = vxor.u32 %v602, 2147483648
  %v621 = vxor.u32 %v604, 2147483648
  %v622 = vmul.f32 %v606, 1.442695
  %v623 = vpow.pop %v622
  %v624 = vmul.f32 %v607, 1.442695
  %v625 = vpow.pop %v624
  %v626 = vmul.f32 %v608, 1.442695
  %v627 = vpow.pop %v626
  %v628 = vmul.f32 %v609, 1.442695
  %v629 = vpow.pop %v628
  %v630 = vmul.f32 %v610, 1.442695
  %v631 = vpow.pop %v630
  %v632 = vmul.f32 %v611, 1.442695
  %v633 = vpow.pop %v632
  %v634 = vmul.f32 %v612, 1.442695
  %v635 = vpow.pop %v634
  %v636 = vmul.f32 %v613, 1.442695
  %v637 = vpow.pop %v636
  %v638 = vmul.f32 %v614, 1.442695
  %v639 = vpow.pop %v638
  %v640 = vmul.f32 %v615, 1.442695
  %v641 = vpow.pop %v640
  %v642 = vmul.f32 %v616, 1.442695
  %v643 = vpow.pop %v642
  %v644 = vmul.f32 %v617, 1.442695
  %v645 = vpow.pop %v644
  %v646 = vmul.f32 %v618, 1.442695
  %v647 = vpow.pop %v646
  %v648 = vmul.f32 %v619, 1.442695
  %v649 = vpow.pop %v648
  %v650 = vmul.f32 %v620, 1.442695
  %v651 = vpow.pop %v650
  %v652 = vmul.f32 %v621, 1.442695
  %v653 = vpow.pop %v652
  %v654 = vadd.f32 %v623, 1.0
  %v655 = vadd.f32 %v625, 1.0
  %v656 = vadd.f32 %v627, 1.0
  %v657 = vadd.f32 %v629, 1.0
  %v658 = vadd.f32 %v631, 1.0
  %v659 = vadd.f32 %v633, 1.0
  %v660 = vadd.f32 %v635, 1.0
  %v661 = vadd.f32 %v637, 1.0
  %v662 = vadd.f32 %v639, 1.0
  %v663 = vadd.f32 %v641, 1.0
  %v664 = vadd.f32 %v643, 1.0
  %v665 = vadd.f32 %v645, 1.0
  %v666 = vadd.f32 %v647, 1.0
  %v667 = vadd.f32 %v649, 1.0
  %v668 = vadd.f32 %v651, 1.0
  %v669 = vadd.f32 %v653, 1.0
  %v670 = vrcp.pop %v654
  %v671 = vmul.f32 %v654, %v670
  %v672 = vsub.f32 1.0, %v671
  %v673 = vmul.f32 %v670, %v672
  %v674 = vadd.f32 %v670, %v673
  %vm675 = vweird.f32 %v654
  %vm676 = vweird.f32 %v670
  %vm677 = vmor %vm675, %vm676
  %v678 = vsel %vm677, %v670, %v674
  %v679 = vand.u32 2147483647, %v654
  %vm680 = vcmp.eq.f32.partialorder %v679, 8.507059e+37
  %v681 = vand.u32 %v654, 2147483648
  %v682 = vor.u32 1.1754944e-38, %v681
  %v683 = vsel %vm680, %v682, %v678
  %v684 = vmul.f32 1.0, %v683
  %v685 = vrcp.pop %v655
  %v686 = vmul.f32 %v655, %v685
  %v687 = vsub.f32 1.0, %v686
  %v688 = vmul.f32 %v685, %v687
  %v689 = vadd.f32 %v685, %v688
  %vm690 = vweird.f32 %v655
  %vm691 = vweird.f32 %v685
  %vm692 = vmor %vm690, %vm691
  %v693 = vsel %vm692, %v685, %v689
  %v694 = vand.u32 2147483647, %v655
  %vm695 = vcmp.eq.f32.partialorder %v694, 8.507059e+37
  %v696 = vand.u32 %v655, 2147483648
  %v697 = vor.u32 1.1754944e-38, %v696
  %v698 = vsel %vm695, %v697, %v693
  %v699 = vmul.f32 1.0, %v698
  %v700 = vrcp.pop %v656
  %v701 = vmul.f32 %v656, %v700
  %v702 = vsub.f32 1.0, %v701
  %v703 = vmul.f32 %v700, %v702
  %v704 = vadd.f32 %v700, %v703
  %vm705 = vweird.f32 %v656
  %vm706 = vweird.f32 %v700
  %vm707 = vmor %vm705, %vm706
  %v708 = vsel %vm707, %v700, %v704
  %v709 = vand.u32 2147483647, %v656
  %vm710 = vcmp.eq.f32.partialorder %v709, 8.507059e+37
  %v711 = vand.u32 %v656, 2147483648
  %v712 = vor.u32 1.1754944e-38, %v711
  %v713 = vsel %vm710, %v712, %v708
  %v714 = vmul.f32 1.0, %v713
  %v715 = vrcp.pop %v657
  %v716 = vmul.f32 %v657, %v715
  %v717 = vsub.f32 1.0, %v716
  %v718 = vmul.f32 %v715, %v717
  %v719 = vadd.f32 %v715, %v718
  %vm720 = vweird.f32 %v657
  %vm721 = vweird.f32 %v715
  %vm722 = vmor %vm720, %vm721
  %v723 = vsel %vm722, %v715, %v719
  %v724 = vand.u32 2147483647, %v657
  %vm725 = vcmp.eq.f32.partialorder %v724, 8.507059e+37
  %v726 = vand.u32 %v657, 2147483648
  %v727 = vor.u32 1.1754944e-38, %v726
  %v728 = vsel %vm725, %v727, %v723
  %v729 = vmul.f32 1.0, %v728
  %v730 = vrcp.pop %v658
  %v731 = vmul.f32 %v658, %v730
  %v732 = vsub.f32 1.0, %v731
  %v733 = vmul.f32 %v730, %v732
  %v734 = vadd.f32 %v730, %v733
  %vm735 = vweird.f32 %v658
  %vm736 = vweird.f32 %v730
  %vm737 = vmor %vm735, %vm736
  %v738 = vsel %vm737, %v730, %v734
  %v739 = vand.u32 2147483647, %v658
  %vm740 = vcmp.eq.f32.partialorder %v739, 8.507059e+37
  %v741 = vand.u32 %v658, 2147483648
  %v742 = vor.u32 1.1754944e-38, %v741
  %v743 = vsel %vm740, %v742, %v738
  %v744 = vmul.f32 1.0, %v743
  %v745 = vrcp.pop %v659
  %v746 = vmul.f32 %v659, %v745
  %v747 = vsub.f32 1.0, %v746
  %v748 = vmul.f32 %v745, %v747
  %v749 = vadd.f32 %v745, %v748
  %vm750 = vweird.f32 %v659
  %vm751 = vweird.f32 %v745
  %vm752 = vmor %vm750, %vm751
  %v753 = vsel %vm752, %v745, %v749
  %v754 = vand.u32 2147483647, %v659
  %vm755 = vcmp.eq.f32.partialorder %v754, 8.507059e+37
  %v756 = vand.u32 %v659, 2147483648
  %v757 = vor.u32 1.1754944e-38, %v756
  %v758 = vsel %vm755, %v757, %v753
  %v759 = vmul.f32 1.0, %v758
  %v760 = vrcp.pop %v660
  %v761 = vmul.f32 %v660, %v760
  %v762 = vsub.f32 1.0, %v761
  %v763 = vmul.f32 %v760, %v762
  %v764 = vadd.f32 %v760, %v763
  %vm765 = vweird.f32 %v660
  %vm766 = vweird.f32 %v760
  %vm767 = vmor %vm765, %vm766
  %v768 = vsel %vm767, %v760, %v764
  %v769 = vand.u32 2147483647, %v660
  %vm770 = vcmp.eq.f32.partialorder %v769, 8.507059e+37
  %v771 = vand.u32 %v660, 2147483648
  %v772 = vor.u32 1.1754944e-38, %v771
  %v773 = vsel %vm770, %v772, %v768
  %v774 = vmul.f32 1.0, %v773
  %v775 = vrcp.pop %v661
  %v776 = vmul.f32 %v661, %v775
  %v777 = vsub.f32 1.0, %v776
  %v778 = vmul.f32 %v775, %v777
  %v779 = vadd.f32 %v775, %v778
  %vm780 = vweird.f32 %v661
  %vm781 = vweird.f32 %v775
  %vm782 = vmor %vm780, %vm781
  %v783 = vsel %vm782, %v775, %v779
  %v784 = vand.u32 2147483647, %v661
  %vm785 = vcmp.eq.f32.partialorder %v784, 8.507059e+37
  %v786 = vand.u32 %v661, 2147483648
  %v787 = vor.u32 1.1754944e-38, %v786
  %v788 = vsel %vm785, %v787, %v783
  %v789 = vmul.f32 1.0, %v788
  %v790 = vrcp.pop %v662
  %v791 = vmul.f32 %v662, %v790
  %v792 = vsub.f32 1.0, %v791
  %v793 = vmul.f32 %v790, %v792
  %v794 = vadd.f32 %v790, %v793
  %vm795 = vweird.f32 %v662
  %vm796 = vweird.f32 %v790
  %vm797 = vmor %vm795, %vm796
  %v798 = vsel %vm797, %v790, %v794
  %v799 = vand.u32 2147483647, %v662
  %vm800 = vcmp.eq.f32.partialorder %v799, 8.507059e+37
  %v801 = vand.u32 %v662, 2147483648
  %v802 = vor.u32 1.1754944e-38, %v801
  %v803 = vsel %vm800, %v802, %v798
  %v804 = vmul.f32 1.0, %v803
  %v805 = vrcp.pop %v663
  %v806 = vmul.f32 %v663, %v805
  %v807 = vsub.f32 1.0, %v806
  %v808 = vmul.f32 %v805, %v807
  %v809 = vadd.f32 %v805, %v808
  %vm810 = vweird.f32 %v663
  %vm811 = vweird.f32 %v805
  %vm812 = vmor %vm810, %vm811
  %v813 = vsel %vm812, %v805, %v809
  %v814 = vand.u32 2147483647, %v663
  %vm815 = vcmp.eq.f32.partialorder %v814, 8.507059e+37
  %v816 = vand.u32 %v663, 2147483648
  %v817 = vor.u32 1.1754944e-38, %v816
  %v818 = vsel %vm815, %v817, %v813
  %v819 = vmul.f32 1.0, %v818
  %v820 = vrcp.pop %v664
  %v821 = vmul.f32 %v664, %v820
  %v822 = vsub.f32 1.0, %v821
  %v823 = vmul.f32 %v820, %v822
  %v824 = vadd.f32 %v820, %v823
  %vm825 = vweird.f32 %v664
  %vm826 = vweird.f32 %v820
  %vm827 = vmor %vm825, %vm826
  %v828 = vsel %vm827, %v820, %v824
  %v829 = vand.u32 2147483647, %v664
  %vm830 = vcmp.eq.f32.partialorder %v829, 8.507059e+37
  %v831 = vand.u32 %v664, 2147483648
  %v832 = vor.u32 1.1754944e-38, %v831
  %v833 = vsel %vm830, %v832, %v828
  %v834 = vmul.f32 1.0, %v833
  %v835 = vrcp.pop %v665
  %v836 = vmul.f32 %v665, %v835
  %v837 = vsub.f32 1.0, %v836
  %v838 = vmul.f32 %v835, %v837
  %v839 = vadd.f32 %v835, %v838
  %vm840 = vweird.f32 %v665
  %vm841 = vweird.f32 %v835
  %vm842 = vmor %vm840, %vm841
  %v843 = vsel %vm842, %v835, %v839
  %v844 = vand.u32 2147483647, %v665
  %vm845 = vcmp.eq.f32.partialorder %v844, 8.507059e+37
  %v846 = vand.u32 %v665, 2147483648
  %v847 = vor.u32 1.1754944e-38, %v846
  %v848 = vsel %vm845, %v847, %v843
  %v849 = vmul.f32 1.0, %v848
  %v850 = vrcp.pop %v666
  %v851 = vmul.f32 %v666, %v850
  %v852 = vsub.f32 1.0, %v851
  %v853 = vmul.f32 %v850, %v852
  %v854 = vadd.f32 %v850, %v853
  %vm855 = vweird.f32 %v666
  %vm856 = vweird.f32 %v850
  %vm857 = vmor %vm855, %vm856
  %v858 = vsel %vm857, %v850, %v854
  %v859 = vand.u32 2147483647, %v666
  %vm860 = vcmp.eq.f32.partialorder %v859, 8.507059e+37
  %v861 = vand.u32 %v666, 2147483648
  %v862 = vor.u32 1.1754944e-38, %v861
  %v863 = vsel %vm860, %v862, %v858
  %v864 = vmul.f32 1.0, %v863
  %v865 = vrcp.pop %v667
  %v866 = vmul.f32 %v667, %v865
  %v867 = vsub.f32 1.0, %v866
  %v868 = vmul.f32 %v865, %v867
  %v869 = vadd.f32 %v865, %v868
  %vm870 = vweird.f32 %v667
  %vm871 = vweird.f32 %v865
  %vm872 = vmor %vm870, %vm871
  %v873 = vsel %vm872, %v865, %v869
  %v874 = vand.u32 2147483647, %v667
  %vm875 = vcmp.eq.f32.partialorder %v874, 8.507059e+37
  %v876 = vand.u32 %v667, 2147483648
  %v877 = vor.u32 1.1754944e-38, %v876
  %v878 = vsel %vm875, %v877, %v873
  %v879 = vmul.f32 1.0, %v878
  %v880 = vrcp.pop %v668
  %v881 = vmul.f32 %v668, %v880
  %v882 = vsub.f32 1.0, %v881
  %v883 = vmul.f32 %v880, %v882
  %v884 = vadd.f32 %v880, %v883
  %vm885 = vweird.f32 %v668
  %vm886 = vweird.f32 %v880
  %vm887 = vmor %vm885, %vm886
  %v888 = vsel %vm887, %v880, %v884
  %v889 = vand.u32 2147483647, %v668
  %vm890 = vcmp.eq.f32.partialorder %v889, 8.507059e+37
  %v891 = vand.u32 %v668, 2147483648
  %v892 = vor.u32 1.1754944e-38, %v891
  %v893 = vsel %vm890, %v892, %v888
  %v894 = vmul.f32 1.0, %v893
  %v895 = vrcp.pop %v669
  %v896 = vmul.f32 %v669, %v895
  %v897 = vsub.f32 1.0, %v896
  %v898 = vmul.f32 %v895, %v897
  %v899 = vadd.f32 %v895, %v898
  %vm900 = vweird.f32 %v669
  %vm901 = vweird.f32 %v895
  %vm902 = vmor %vm900, %vm901
  %v903 = vsel %vm902, %v895, %v899
  %v904 = vand.u32 2147483647, %v669
  %vm905 = vcmp.eq.f32.partialorder %v904, 8.507059e+37
  %v906 = vand.u32 %v669, 2147483648
  %v907 = vor.u32 1.1754944e-38, %v906
  %v908 = vsel %vm905, %v907, %v903
  %v909 = vmul.f32 1.0, %v908
  %910 = vst [vmem:[%s9] sm:$0xff] %v684
  %911 = vst [vmem:[%s9 + $0x8] sm:$0xff] %v699
  %912 = vst [vmem:[%s9 + $0x10] sm:$0xff] %v714
  %913 = vst [vmem:[%s9 + $0x18] sm:$0xff] %v729
  %914 = vst [vmem:[%s9 + $0x20] sm:$0xff] %v744
  %915 = vst [vmem:[%s9 + $0x28] sm:$0xff] %v759
  %916 = vst [vmem:[%s9 + $0x30] sm:$0xff] %v774
  %917 = vst [vmem:[%s9 + $0x38] sm:$0xff] %v789
  %918 = vst [vmem:[%s9 + $0x40] sm:$0xff] %v804
  %919 = vst [vmem:[%s9 + $0x48] sm:$0xff] %v819
  %920 = vst [vmem:[%s9 + $0x50] sm:$0xff] %v834
  %921 = vst [vmem:[%s9 + $0x58] sm:$0xff] %v849
  %922 = vst [vmem:[%s9 + $0x60] sm:$0xff] %v864
  %923 = vst [vmem:[%s9 + $0x68] sm:$0xff] %v879
  %924 = vst [vmem:[%s9 + $0x70] sm:$0xff] %v894
  %925 = vst [vmem:[%s9 + $0x78] sm:$0xff] %v909
  // Predicated region
  $region38: #{deepbsl_forward.1} parent=0 // pred_check
    _
  $region39: #{deepbsl_forward.1} parent=0 // pred_check_branch
    %927 = sbr.rel (0) target = $region41
  $region40: #{deepbsl_forward.1} parent=0 // pred_region
    _
  $region41: #{deepbsl_forward.1} parent=0 // pred_fallthru
    _
  // Predicated region
  $region42: #{deepbsl_forward.1} parent=0 // pred_check
    _
  $region43: #{deepbsl_forward.1} parent=0 // pred_check_branch
    %929 = sbr.rel (0) target = $region45
  $region44: #{deepbsl_forward.1} parent=0 // pred_region
    _
  $region45: #{deepbsl_forward.1} parent=0 // pred_fallthru
    _

</llo_original>
